<compile_context>
chip_gen: v6e
topology: v6e:2x2x1
jax: 0.10.0
libtpu: 0.0.40
codegen_flags: <defaults>
</compile_context>

<pallas_src>
import functools

import jax
import jax.numpy as jnp
from jax.experimental import pallas as pl
from jax.experimental.pallas import tpu as pltpu


def _filter_relu_kernel(x_ref, o_ref):
    # Elementwise clamp on the VPU.  Bounds are cast to the input dtype
    # explicitly (matches torch.clamp scalar->tensor-dtype conversion; note
    # that in bf16 the upper bound 0.99 rounds to 0.98828125).
    dt = x_ref.dtype
    o_ref[...] = jnp.clip(x_ref[...], jnp.asarray(0.5, dt), jnp.asarray(0.99, dt))


def _round_up(a: int, b: int) -> int:
    return -(-a // b) * b


@functools.lru_cache(maxsize=1)
def _multi_tensorcore_chip() -> bool:
    """Best-effort: True on chips with >1 TensorCore per chip (v7x)."""
    try:
        kind = jax.devices()[0].device_kind.lower()
    except Exception:
        return False
    return "v7" in kind


def _filter_relu_2d(x2d, sublane, target_block_bytes, donate):
    rows, lanes = x2d.shape
    dtype = x2d.dtype
    itemsize = jnp.dtype(dtype).itemsize

    # Row tile targeting ~target_block_bytes per block; must be a multiple of
    # the sublane packing (8 f32 / 16 bf16 / 32 int8) or span the full extent.
    tr = (target_block_bytes // (lanes * itemsize)) // sublane * sublane
    tr = max(tr, sublane)
    if tr >= rows:
        tr = rows
    g = pl.cdiv(rows, tr)

    # v7x has 2 TensorCores: with dimension_semantics=("parallel",) the grid is
    # sharded across them, so guarantee >=2 (preferably an even number of)
    # steps.  Gated off on single-TC chips (v5e/v6e) where an extra step would
    # only add ~0.35 us of overhead for no gain.
    if _multi_tensorcore_chip():
        if g == 1 and rows > sublane:
            tr = min(_round_up(-(-rows // 2), sublane), rows)
            g = pl.cdiv(rows, tr)
        elif g % 2 == 1 and 1 < g <= 16:
            tr_even = _round_up(pl.cdiv(rows, g + 1), sublane)
            if tr_even >= sublane and pl.cdiv(rows, tr_even) % 2 == 0:
                tr = tr_even
                g = pl.cdiv(rows, tr)

    block_bytes = tr * lanes * itemsize
    # Explicit scoped-VMEM budget: in + out, double buffered (~4x block) plus
    # headroom, capped at 32 MiB so it stays portable on v5e/v6e and inside
    # v7x's smaller 64 MiB physical VMEM.
    vmem_limit = int(min(max(6 * block_bytes, 16 * 1024 * 1024), 32 * 1024 * 1024))

    return pl.pallas_call(
        _filter_relu_kernel,
        out_shape=jax.ShapeDtypeStruct((rows, lanes), dtype),
        grid_spec=pltpu.PrefetchScalarGridSpec(
            num_scalar_prefetch=0,
            grid=(g,),
            # Ragged last block (rows % tr != 0) is clipped by Pallas.
            in_specs=[pl.BlockSpec((tr, lanes), lambda i: (i, 0))],
            out_specs=pl.BlockSpec((tr, lanes), lambda i: (i, 0)),
        ),
        input_output_aliases=({0: 0} if donate else {}),
        compiler_params=pltpu.CompilerParams(
            dimension_semantics=("parallel",),
            vmem_limit_bytes=vmem_limit,
        ),
    )(x2d)


def filter_relu(x, *, target_block_bytes: int = 4 * 1024 * 1024,
                donate_input: bool = False):
    """Forward pass of FilterReLU: clamp(x, 0.5, 0.99) for floating dtypes.

    Notes:
      - Bounds are converted to x.dtype (torch.clamp semantics); in bf16 the
        upper bound rounds to 0.98828125.
      - Set donate_input=True only when the caller actually donates x (e.g.
        jit donate_argnums); otherwise XLA inserts a defensive copy.
    """
    orig_shape = x.shape
    dtype = x.dtype
    if not jnp.issubdtype(dtype, jnp.floating):
        raise TypeError(f"filter_relu requires a floating dtype, got {dtype}")
    n = x.size
    if n == 0:
        return x

    itemsize = jnp.dtype(dtype).itemsize
    sublane = max(8, 32 // max(itemsize, 1))   # 8 f32 / 16 bf16 / 32 fp8

    # Widest lane-dense last dim (multiple of 128) dividing n exactly, prefer a
    # factoring that keeps at least one full sublane tile of rows.
    lanes = None
    for cand in (2048, 1024, 512, 256, 128):
        if n % cand == 0 and (n // cand) >= sublane:
            lanes = cand
            break
    if lanes is None:
        for cand in (2048, 1024, 512, 256, 128):
            if n % cand == 0:
                lanes = cand
                break

    if lanes is not None:
        # Fast path: pure metadata reshape, no extra HBM passes.
        rows = n // lanes
        out2d = _filter_relu_2d(jnp.reshape(x, (rows, lanes)), sublane,
                                target_block_bytes, donate_input)
        return out2d.reshape(orig_shape)

    # Ragged path (n not divisible by 128): kernel on the largest 128-divisible
    # prefix, plain clip on the (<128 element) tail.  Avoids the two extra full
    # HBM passes a pad->kernel->slice pipeline would cost.
    lo = jnp.asarray(0.5, dtype)
    hi = jnp.asarray(0.99, dtype)
    flat = jnp.reshape(x, (-1,))
    n_prefix = (n // 128) * 128
    tail = jnp.clip(flat[n_prefix:], lo, hi)
    if n_prefix == 0:
        return tail.reshape(orig_shape)
    head2d = _filter_relu_2d(flat[:n_prefix].reshape(n_prefix // 128, 128),
                             sublane, target_block_bytes, donate_input)
    return jnp.concatenate([head2d.reshape(-1), tail]).reshape(orig_shape)


if __name__ == "__main__":
    key = jax.random.PRNGKey(0)
    k1, k2, k3, k4, k5 = jax.random.split(key, 5)

    # Primary check: small NCHW input consistent with a conv-style pipeline.
    # References are computed BEFORE the kernel runs (safe w.r.t. donation).
    x = jax.random.normal(k1, (2, 4, 16, 16), dtype=jnp.float32)
    ref = jnp.clip(x, 0.5, 0.99)
    out = filter_relu(x)
    jax.block_until_ready(out)
    assert out.shape == x.shape and out.dtype == x.dtype
    assert jnp.allclose(out, ref), "mismatch vs reference clamp (primary)"

    # Multi-block cdiv path with a ragged last block (small block size forces
    # several grid steps).
    x2 = jax.random.normal(k2, (2, 4, 40, 128), dtype=jnp.float32)
    ref2 = jnp.clip(x2, 0.5, 0.99)
    out2 = filter_relu(x2, target_block_bytes=64 * 1024)
    jax.block_until_ready(out2)
    assert jnp.allclose(out2, ref2), "mismatch vs reference clamp (ragged grid)"

    # Ragged element count (not divisible by 128): prefix kernel + clip tail.
    x3 = jax.random.normal(k3, (2, 200), dtype=jnp.float32)
    ref3 = jnp.clip(x3, 0.5, 0.99)
    out3 = filter_relu(x3)
    jax.block_until_ready(out3)
    assert jnp.allclose(out3, ref3), "mismatch vs reference clamp (ragged count)"

    # bf16 path (sublane packing 16; bounds round to bf16 exactly as reference).
    x4 = jax.random.normal(k4, (2, 4, 16, 16), dtype=jnp.float32).astype(jnp.bfloat16)
    ref4 = jnp.clip(x4, jnp.asarray(0.5, jnp.bfloat16), jnp.asarray(0.99, jnp.bfloat16))
    out4 = filter_relu(x4)
    jax.block_until_ready(out4)
    assert jnp.array_equal(out4, ref4), "mismatch vs reference clamp (bf16)"

    # Donated-input path (input_output_aliases={0: 0}).
    x5 = jax.random.normal(k5, (4, 8, 128), dtype=jnp.float32)
    ref5 = jnp.clip(x5, 0.5, 0.99)
    out5 = filter_relu(x5, donate_input=True)
    jax.block_until_ready(out5)
    assert jnp.allclose(out5, ref5), "mismatch vs reference clamp (donated input)"

    # TODO(synk): MyReLU.backward (masked gradient pass-through) is not part of
    # the forward module and is not implemented here.

    print("KERNEL_OK")
</pallas_src>

<mosaic_0001>
module attributes {stable_mosaic.version = 11 : i64} {
  func.func @_filter_relu_kernel(%arg0: i32, %arg1: memref<8x256xf32, #tpu.memory_space<vmem>>, %arg2: memref<8x256xf32, #tpu.memory_space<vmem>>) attributes {dimension_semantics = [#tpu.dimension_semantics<parallel>], iteration_bounds = array<i64: 1>, scalar_prefetch = 0 : i64, scratch_operands = 0 : i64, tpu.core_type = #tpu.core_type<tc>, window_params = [{transform_indices = @transform_0, window_bounds = array<i64: 8, 256>}, {transform_indices = @transform_1, window_bounds = array<i64: 8, 256>}]} {
    %c0 = arith.constant 0 : index
    %c0_0 = arith.constant 0 : index
    %0 = vector.load %arg1[%c0, %c0_0] : memref<8x256xf32, #tpu.memory_space<vmem>>, vector<8x256xf32>
    %cst = arith.constant 5.000000e-01 : f32
    %cst_1 = arith.constant 9.900000e-01 : f32
    %1 = vector.broadcast %cst : f32 to vector<8x256xf32>
    %2 = arith.maximumf %1, %0 : vector<8x256xf32>
    %3 = vector.broadcast %cst_1 : f32 to vector<8x256xf32>
    %4 = arith.minimumf %3, %2 : vector<8x256xf32>
    %c0_2 = arith.constant 0 : index
    %c0_3 = arith.constant 0 : index
    %5 = vector.load %arg2[%c0_2, %c0_3] : memref<8x256xf32, #tpu.memory_space<vmem>>, vector<8x256xf32>
    tpu.vector_store %arg2[%c0_2, %c0_3], %4 {strides = array<i32>} : memref<8x256xf32, #tpu.memory_space<vmem>>, vector<8x256xf32>,
    return
  }
  func.func @transform_0(%arg0: i32) -> (i32, i32) {
    %c0_i32 = arith.constant 0 : i32
    %c0_i32_0 = arith.constant 0 : i32
    return %arg0, %c0_i32 : i32, i32
  }
  func.func @transform_1(%arg0: i32) -> (i32, i32) {
    %c0_i32 = arith.constant 0 : i32
    %c0_i32_0 = arith.constant 0 : i32
    return %arg0, %c0_i32 : i32, i32
  }
}

</mosaic_0001>

<llo_original>
// kernel: tpu_custom_call.1
$region0: #{tpu_custom_call.1}
  #allocation0 [shape = 'u32[]', space=smem, size = 0x4, offset = 0x4, fixed_abs, tag = 'smem constant byte address 0x4 - core index']
  #allocation1 [shape = 'u32[144,128]{1,0:T(1,128)}', space=vmem, size = 0x12000, scoped, tag = 'internal scratch']
  %s0 = inlined_call_operand.hbm [shape: f32[8,256], index: 0, kind: input, shape index: {}]
  %s1 = inlined_call_operand.hbm [shape: f32[8,256], index: 1, kind: output, shape index: {}]
  %s2 = sld [smem:[#allocation0]]
  $region18: #{tpu_custom_call.1} parent=0
    _
  %s4 = ssub.s32 1, %s2
  %s5 = scalar_select 0, %s4, %s2
  $region1: #{tpu_custom_call.1} parent=0
    #allocation2 [shape = 'u8[8192]{0}', space=vmem, size = 0x2000, scoped, tag = 'input window, operand 0, single buffered']
    #allocation3 [shape = 's32[1]{0}', space=sflag, size = 0x4, scoped, tag = 'scoped memory for tpu_custom_call.1']
    #allocation4 [shape = 's32[1]{0}', space=sflag, size = 0x4, scoped, tag = 'scoped memory for tpu_custom_call.1']
    #allocation5 [shape = 'u8[8192]{0}', space=vmem, size = 0x2000, scoped, tag = 'output window, operand 0, single buffered']
    %6 = vsyncpa [#allocation3], 0
    %7 = vsyncpa [#allocation4], 0
    // Predicated region
    $region2: #{tpu_custom_call.1} parent=1 // pred_check
      _
    $region3: #{tpu_custom_call.1} parent=1 // pred_check_branch
      %9 = sbr.rel (0) target = $region5
    $region4: #{tpu_custom_call.1} parent=1 // pred_region
      %s11 = ssub.s32 256, 256
      %12 = vsyncadd [#allocation3], %s11
      %s14 = sshll.u32 [#allocation2], 4
      %s15 = int_to_ptr.vmem [resolvable:$true] %s14
      %17 = dma.hbm_to_vmem [thread:$0]  %s0, 256, %s15, [#allocation3]
    $region5: #{tpu_custom_call.1} parent=1 // pred_fallthru
      _
    // Predicated region
    $region6: #{tpu_custom_call.1} parent=1 // pred_check
      _
    $region7: #{tpu_custom_call.1} parent=1 // pred_check_branch
      %19 = sbr.rel (0) target = $region9
    $region8: #{tpu_custom_call.1} parent=1 // pred_region
      %20 = dma.done [#allocation3], 256
    $region9: #{tpu_custom_call.1} parent=1 // pred_fallthru
      _
    %v21 = vld [vmem:[#allocation2] sm:$0xff]
    %v22 = vld [vmem:[#allocation2 + $0x8] sm:$0xff]
    %v23 = vmax.f32 %v21, 0.5
    %v24 = vmax.f32 %v22, 0.5
    %v25 = vmin.f32 %v23, 0.99
    %v26 = vmin.f32 %v24, 0.99
    %27 = vst [vmem:[#allocation5] sm:$0xff] %v25
    %28 = vst [vmem:[#allocation5 + $0x8] sm:$0xff] %v26
    // Predicated region
    $region10: #{tpu_custom_call.1} parent=1 // pred_check
      _
    $region11: #{tpu_custom_call.1} parent=1 // pred_check_branch
      %30 = sbr.rel (0) target = $region13
    $region12: #{tpu_custom_call.1} parent=1 // pred_region
      %s32 = ssub.s32 256, 256
      %33 = vsyncadd [#allocation4], %s32
      %s35 = sshll.u32 [#allocation5], 4
      %s36 = int_to_ptr.vmem [resolvable:$true] %s35
      %38 = dma.vmem_to_hbm [thread:$0]  %s36, 256, %s1, [#allocation4]
    $region13: #{tpu_custom_call.1} parent=1 // pred_fallthru
      _
    // Predicated region
    $region14: #{tpu_custom_call.1} parent=1 // pred_check
      _
    $region15: #{tpu_custom_call.1} parent=1 // pred_check_branch
      %40 = sbr.rel (0) target = $region17
    $region16: #{tpu_custom_call.1} parent=1 // pred_region
      %41 = dma.done [#allocation4], 256
    $region17: #{tpu_custom_call.1} parent=1 // pred_fallthru
      _
    %42 = vsyncpa [#allocation3], 1
    %43 = vsyncpa [#allocation4], 1

</llo_original>
